<compile_context>
chip_gen: v6e
topology: v6e:2x2x1
jax: 0.10.0
libtpu: 0.0.40
codegen_flags: <defaults>
</compile_context>

<pallas_src>
import jax
import jax.numpy as jnp
from jax.experimental import pallas as pl
from jax.experimental.pallas import tpu as pltpu

INPUT_SIZE = 32
HIDDEN = 32
SEQ = 8


def lstm_kernel(x_ref, w_ref, misc_ref, out_ref):
    """Fused single-layer LSTM recurrence + Linear(32,1) + sigmoid (last step).

    x_ref:    (S, 32)    input sequence (batch squeezed)
    w_ref:    (64, 128)  rows 0:32  = W_ih (gates i|f|g|o along lanes, i/f/o cols pre-scaled by 0.5)
                         rows 32:64 = W_hh (same layout / pre-scaling)
    misc_ref: (8, 128)   row 0: combined bias b_ih+b_hh (i/f/o cols pre-scaled by 0.5)
                         row 1: post-tanh scale  (0.5|0.5|1.0|0.5 per gate block)
                         row 2: post-tanh bias   (0.5|0.5|0.0|0.5 per gate block)
                         row 3, lanes 0:32: h0
                         row 4, lanes 0:32: c0
                         row 5, lanes 0:32: linear weight row
                         row 6, lane 0:     linear bias
    out_ref:  (1, 1)     sigmoid(linear(h_last)) == torch out[-1]
    """
    S = x_ref.shape[0]
    H = HIDDEN

    # --- Loop-invariant loads (once, before the recurrence) ----------------
    w = w_ref[...]                      # (64, 128)
    w_ih = w[0:H, :]                    # (32, 128)
    w_hh = w[H:2 * H, :]                # (32, 128)

    b_row = misc_ref[0:1, :]            # (1, 128)
    pscale = misc_ref[1:2, :]           # (1, 128)
    pbias = misc_ref[2:3, :]            # (1, 128)
    h = misc_ref[3:4, :][:, 0:H]        # (1, 32)
    c = misc_ref[4:5, :][:, 0:H]        # (1, 32)
    w_lin = misc_ref[5:6, :][:, 0:H]    # (1, 32)
    b_lin = misc_ref[6:7, :][:, 0:1]    # (1, 1)

    # Input projection for ALL timesteps in one lane-dense MXU op, bias folded in.
    x_proj = (jnp.dot(x_ref[...], w_ih, preferred_element_type=jnp.float32)
              + b_row)                  # (S, 128)

    # --- Recurrence: fully unrolled (S = 8, fixed at trace time) -----------
    # TODO(synk): if the bundle dump shows Mosaic re-staging the invariant RHS
    # (w_hh) into the MXU every step, switch to pltpu.matmul_push_rhs /
    # matmul_acc_lhs / matmul_pop to keep it resident across the 8 steps.
    for t in range(S):
        # One MXU push per step on the serial chain.
        gates = (x_proj[t:t + 1, :]
                 + jnp.dot(h, w_hh, preferred_element_type=jnp.float32))   # (1, 128)

        # One 128-lane tanh (EUP) + one per-lane affine (VPU):
        #   i|f|o lanes: 0.5*tanh(z/2)+0.5 == sigmoid(z)   (0.5 pre-scale baked into weights)
        #   g lanes:     1.0*tanh(z)+0.0  == tanh(z)
        nl = jnp.tanh(gates) * pscale + pbias

        i_g = nl[:, 0 * H:1 * H]
        f_g = nl[:, 1 * H:2 * H]
        g_g = nl[:, 2 * H:3 * H]
        o_g = nl[:, 3 * H:4 * H]

        c = f_g * c + i_g * g_g
        h = o_g * jnp.tanh(c)           # 32-lane tanh

    # --- Final Linear(32 -> 1) + sigmoid on the last hidden state ----------
    logit = jnp.sum(h * w_lin, axis=-1, keepdims=True) + b_lin
    out_ref[...] = jax.nn.sigmoid(logit)


def lstm_last_sigmoid(x, w_slab, misc):
    """x: (S, 32) float32 -> (1, 1) float32 (== torch model's x[-1], batch=1)."""
    return pl.pallas_call(
        lstm_kernel,
        out_shape=jax.ShapeDtypeStruct((1, 1), jnp.float32),
        in_specs=[
            pl.BlockSpec(memory_space=pltpu.VMEM),   # x           (8, 32)
            pl.BlockSpec(memory_space=pltpu.VMEM),   # weight slab (64, 128)
            pl.BlockSpec(memory_space=pltpu.VMEM),   # misc slab   (8, 128)
        ],
        out_specs=pl.BlockSpec(memory_space=pltpu.VMEM),
    )(x, w_slab, misc)


def make_params(key):
    """Deterministic synthetic parameters matching nn.LSTM(32,32) + nn.Linear(32,1).

    Returns (per_gate_params_for_reference, (w_slab, misc)) where the fused
    layout concatenates gates along lanes in PyTorch order i|f|g|o and bakes in
    the 0.5 pre-scale used by the in-kernel tanh-based sigmoid.
    """
    ks = jax.random.split(key, 8)
    scale = 1.0 / jnp.sqrt(HIDDEN)
    # PyTorch stores weight_ih_l0 as (4H, I); keep per-gate, pre-transposed (I, H).
    w_ih = jax.random.uniform(ks[0], (4, INPUT_SIZE, HIDDEN), jnp.float32, -scale, scale)
    w_hh = jax.random.uniform(ks[1], (4, HIDDEN, HIDDEN), jnp.float32, -scale, scale)
    b_ih = jax.random.uniform(ks[2], (4, 1, HIDDEN), jnp.float32, -scale, scale)
    b_hh = jax.random.uniform(ks[3], (4, 1, HIDDEN), jnp.float32, -scale, scale)
    b = b_ih + b_hh
    # Model.__init__ uses torch.randn for the fixed (h0, c0); batch axis squeezed.
    h0 = jax.random.normal(ks[4], (1, HIDDEN), jnp.float32)
    c0 = jax.random.normal(ks[5], (1, HIDDEN), jnp.float32)
    w_lin = jax.random.uniform(ks[6], (1, HIDDEN), jnp.float32, -scale, scale)
    b_lin = jax.random.uniform(ks[7], (1, 1), jnp.float32, -scale, scale)

    per_gate = (w_ih, w_hh, b, h0, c0, w_lin, b_lin)

    # Fused lane-concatenated layout (i|f|g|o along the 128-lane axis).
    w_ih_cat = jnp.concatenate([w_ih[g] for g in range(4)], axis=-1)   # (32, 128)
    w_hh_cat = jnp.concatenate([w_hh[g] for g in range(4)], axis=-1)   # (32, 128)
    b_cat = jnp.concatenate([b[g] for g in range(4)], axis=-1)         # (1, 128)

    # sigmoid(z) = 0.5*tanh(z/2) + 0.5: pre-scale i|f|o gate COLUMNS by 0.5
    # (g columns unscaled); post-tanh affine applied per lane inside the kernel.
    half = 0.5 * jnp.ones((HIDDEN,), jnp.float32)
    one = jnp.ones((HIDDEN,), jnp.float32)
    zero = jnp.zeros((HIDDEN,), jnp.float32)
    pre_scale = jnp.concatenate([half, half, one, half])[None, :]      # (1, 128)
    post_scale = pre_scale                                             # 0.5|0.5|1.0|0.5
    post_bias = jnp.concatenate([half, half, zero, half])[None, :]     # 0.5|0.5|0.0|0.5

    w_slab = jnp.concatenate([w_ih_cat * pre_scale,
                              w_hh_cat * pre_scale], axis=0)           # (64, 128)

    misc = jnp.zeros((8, 4 * HIDDEN), jnp.float32)                     # (8, 128)
    misc = misc.at[0:1, :].set(b_cat * pre_scale)
    misc = misc.at[1:2, :].set(post_scale)
    misc = misc.at[2:3, :].set(post_bias)
    misc = misc.at[3, 0:HIDDEN].set(h0[0])
    misc = misc.at[4, 0:HIDDEN].set(c0[0])
    misc = misc.at[5, 0:HIDDEN].set(w_lin[0])
    misc = misc.at[6, 0].set(b_lin[0, 0])

    return per_gate, (w_slab, misc)


def reference(x, per_gate_params):
    """Pure-JAX reference of the same forward pass (for correctness check)."""
    (w_ih, w_hh, b, h0, c0, w_lin, b_lin) = per_gate_params
    h, c = h0, c0
    for t in range(x.shape[0]):
        x_t = x[t:t + 1]
        i = jax.nn.sigmoid(x_t @ w_ih[0] + h @ w_hh[0] + b[0])
        f = jax.nn.sigmoid(x_t @ w_ih[1] + h @ w_hh[1] + b[1])
        g = jnp.tanh(x_t @ w_ih[2] + h @ w_hh[2] + b[2])
        o = jax.nn.sigmoid(x_t @ w_ih[3] + h @ w_hh[3] + b[3])
        c = f * c + i * g
        h = o * jnp.tanh(c)
    return jax.nn.sigmoid(jnp.sum(h * w_lin, axis=-1, keepdims=True) + b_lin)


if __name__ == "__main__":
    key = jax.random.PRNGKey(0)
    k_x, k_p = jax.random.split(key)
    x = jax.random.normal(k_x, (SEQ, INPUT_SIZE), jnp.float32)   # torch x: (8, 1, 32), batch squeezed
    per_gate_params, (w_slab, misc) = make_params(k_p)

    out = lstm_last_sigmoid(x, w_slab, misc)
    out = jax.block_until_ready(out)

    ref = reference(x, per_gate_params)
    assert out.shape == (1, 1)
    assert jnp.allclose(out, ref, rtol=1e-4, atol=1e-4), (out, ref)

    print("KERNEL_OK")
</pallas_src>

<mosaic_0001>
module attributes {stable_mosaic.version = 11 : i64} {
  func.func @lstm_kernel(%arg0: memref<8x32xf32, #tpu.memory_space<vmem>>, %arg1: memref<64x128xf32, #tpu.memory_space<vmem>>, %arg2: memref<8x128xf32, #tpu.memory_space<vmem>>, %arg3: memref<1x1xf32, #tpu.memory_space<vmem>>) attributes {dimension_semantics = [], scalar_prefetch = 0 : i64, scratch_operands = 0 : i64, tpu.core_type = #tpu.core_type<tc>} {
    %c0 = arith.constant 0 : index
    %c0_0 = arith.constant 0 : index
    %0 = vector.load %arg1[%c0, %c0_0] : memref<64x128xf32, #tpu.memory_space<vmem>>, vector<64x128xf32>
    %1 = vector.extract_strided_slice %0 {offsets = [0, 0], sizes = [32, 128], strides = [1, 1]} : vector<64x128xf32> to vector<32x128xf32>
    %2 = vector.extract_strided_slice %0 {offsets = [32, 0], sizes = [32, 128], strides = [1, 1]} : vector<64x128xf32> to vector<32x128xf32>
    %c0_1 = arith.constant 0 : index
    %c0_2 = arith.constant 0 : index
    %3 = vector.load %arg2[%c0_1, %c0_2] : memref<8x128xf32, #tpu.memory_space<vmem>>, vector<1x128xf32>
    %c1 = arith.constant 1 : index
    %c0_3 = arith.constant 0 : index
    %4 = vector.load %arg2[%c1, %c0_3] : memref<8x128xf32, #tpu.memory_space<vmem>>, vector<1x128xf32>
    %c2 = arith.constant 2 : index
    %c0_4 = arith.constant 0 : index
    %5 = vector.load %arg2[%c2, %c0_4] : memref<8x128xf32, #tpu.memory_space<vmem>>, vector<1x128xf32>
    %c3 = arith.constant 3 : index
    %c0_5 = arith.constant 0 : index
    %6 = vector.load %arg2[%c3, %c0_5] : memref<8x128xf32, #tpu.memory_space<vmem>>, vector<1x128xf32>
    %7 = vector.extract_strided_slice %6 {offsets = [0, 0], sizes = [1, 32], strides = [1, 1]} : vector<1x128xf32> to vector<1x32xf32>
    %c4 = arith.constant 4 : index
    %c0_6 = arith.constant 0 : index
    %8 = vector.load %arg2[%c4, %c0_6] : memref<8x128xf32, #tpu.memory_space<vmem>>, vector<1x128xf32>
    %9 = vector.extract_strided_slice %8 {offsets = [0, 0], sizes = [1, 32], strides = [1, 1]} : vector<1x128xf32> to vector<1x32xf32>
    %c5 = arith.constant 5 : index
    %c0_7 = arith.constant 0 : index
    %10 = vector.load %arg2[%c5, %c0_7] : memref<8x128xf32, #tpu.memory_space<vmem>>, vector<1x128xf32>
    %11 = vector.extract_strided_slice %10 {offsets = [0, 0], sizes = [1, 32], strides = [1, 1]} : vector<1x128xf32> to vector<1x32xf32>
    %c6 = arith.constant 6 : index
    %c0_8 = arith.constant 0 : index
    %12 = vector.load %arg2[%c6, %c0_8] : memref<8x128xf32, #tpu.memory_space<vmem>>, vector<1x128xf32>
    %13 = vector.extract_strided_slice %12 {offsets = [0, 0], sizes = [1, 1], strides = [1, 1]} : vector<1x128xf32> to vector<1x1xf32>
    %c0_9 = arith.constant 0 : index
    %c0_10 = arith.constant 0 : index
    %14 = vector.load %arg0[%c0_9, %c0_10] : memref<8x32xf32, #tpu.memory_space<vmem>>, vector<8x32xf32>
    %cst = arith.constant dense<0.000000e+00> : vector<8x128xf32>
    %15 = tpu.matmul %14, %1, %cst {dimension_numbers = #tpu.dot_dimension_numbers<[1], [0], [0], [1], [0, 0, 1, 1], [], []>} : vector<8x32xf32>, vector<32x128xf32>, vector<8x128xf32> -> vector<8x128xf32>
    %16 = vector.broadcast %3 : vector<1x128xf32> to vector<8x128xf32>
    %17 = arith.addf %15, %16 : vector<8x128xf32>
    %18 = vector.extract_strided_slice %17 {offsets = [0, 0], sizes = [1, 128], strides = [1, 1]} : vector<8x128xf32> to vector<1x128xf32>
    %cst_11 = arith.constant dense<0.000000e+00> : vector<1x128xf32>
    %19 = tpu.matmul %7, %2, %cst_11 {dimension_numbers = #tpu.dot_dimension_numbers<[1], [0], [0], [1], [0, 0, 1, 1], [], []>} : vector<1x32xf32>, vector<32x128xf32>, vector<1x128xf32> -> vector<1x128xf32>
    %20 = arith.addf %18, %19 : vector<1x128xf32>
    %21 = math.tanh %20 : vector<1x128xf32>
    %22 = arith.mulf %21, %4 : vector<1x128xf32>
    %23 = arith.addf %22, %5 : vector<1x128xf32>
    %24 = vector.extract_strided_slice %23 {offsets = [0, 0], sizes = [1, 32], strides = [1, 1]} : vector<1x128xf32> to vector<1x32xf32>
    %25 = vector.extract_strided_slice %23 {offsets = [0, 32], sizes = [1, 32], strides = [1, 1]} : vector<1x128xf32> to vector<1x32xf32>
    %26 = vector.extract_strided_slice %23 {offsets = [0, 64], sizes = [1, 32], strides = [1, 1]} : vector<1x128xf32> to vector<1x32xf32>
    %27 = vector.extract_strided_slice %23 {offsets = [0, 96], sizes = [1, 32], strides = [1, 1]} : vector<1x128xf32> to vector<1x32xf32>
    %28 = arith.mulf %25, %9 : vector<1x32xf32>
    %29 = arith.mulf %24, %26 : vector<1x32xf32>
    %30 = arith.addf %28, %29 : vector<1x32xf32>
    %31 = math.tanh %30 : vector<1x32xf32>
    %32 = arith.mulf %27, %31 : vector<1x32xf32>
    %33 = vector.extract_strided_slice %17 {offsets = [1, 0], sizes = [1, 128], strides = [1, 1]} : vector<8x128xf32> to vector<1x128xf32>
    %cst_12 = arith.constant dense<0.000000e+00> : vector<1x128xf32>
    %34 = tpu.matmul %32, %2, %cst_12 {dimension_numbers = #tpu.dot_dimension_numbers<[1], [0], [0], [1], [0, 0, 1, 1], [], []>} : vector<1x32xf32>, vector<32x128xf32>, vector<1x128xf32> -> vector<1x128xf32>
    %35 = arith.addf %33, %34 : vector<1x128xf32>
    %36 = math.tanh %35 : vector<1x128xf32>
    %37 = arith.mulf %36, %4 : vector<1x128xf32>
    %38 = arith.addf %37, %5 : vector<1x128xf32>
    %39 = vector.extract_strided_slice %38 {offsets = [0, 0], sizes = [1, 32], strides = [1, 1]} : vector<1x128xf32> to vector<1x32xf32>
    %40 = vector.extract_strided_slice %38 {offsets = [0, 32], sizes = [1, 32], strides = [1, 1]} : vector<1x128xf32> to vector<1x32xf32>
    %41 = vector.extract_strided_slice %38 {offsets = [0, 64], sizes = [1, 32], strides = [1, 1]} : vector<1x128xf32> to vector<1x32xf32>
    %42 = vector.extract_strided_slice %38 {offsets = [0, 96], sizes = [1, 32], strides = [1, 1]} : vector<1x128xf32> to vector<1x32xf32>
    %43 = arith.mulf %40, %30 : vector<1x32xf32>
    %44 = arith.mulf %39, %41 : vector<1x32xf32>
    %45 = arith.addf %43, %44 : vector<1x32xf32>
    %46 = math.tanh %45 : vector<1x32xf32>
    %47 = arith.mulf %42, %46 : vector<1x32xf32>
    %48 = vector.extract_strided_slice %17 {offsets = [2, 0], sizes = [1, 128], strides = [1, 1]} : vector<8x128xf32> to vector<1x128xf32>
    %cst_13 = arith.constant dense<0.000000e+00> : vector<1x128xf32>
    %49 = tpu.matmul %47, %2, %cst_13 {dimension_numbers = #tpu.dot_dimension_numbers<[1], [0], [0], [1], [0, 0, 1, 1], [], []>} : vector<1x32xf32>, vector<32x128xf32>, vector<1x128xf32> -> vector<1x128xf32>
    %50 = arith.addf %48, %49 : vector<1x128xf32>
    %51 = math.tanh %50 : vector<1x128xf32>
    %52 = arith.mulf %51, %4 : vector<1x128xf32>
    %53 = arith.addf %52, %5 : vector<1x128xf32>
    %54 = vector.extract_strided_slice %53 {offsets = [0, 0], sizes = [1, 32], strides = [1, 1]} : vector<1x128xf32> to vector<1x32xf32>
    %55 = vector.extract_strided_slice %53 {offsets = [0, 32], sizes = [1, 32], strides = [1, 1]} : vector<1x128xf32> to vector<1x32xf32>
    %56 = vector.extract_strided_slice %53 {offsets = [0, 64], sizes = [1, 32], strides = [1, 1]} : vector<1x128xf32> to vector<1x32xf32>
    %57 = vector.extract_strided_slice %53 {offsets = [0, 96], sizes = [1, 32], strides = [1, 1]} : vector<1x128xf32> to vector<1x32xf32>
    %58 = arith.mulf %55, %45 : vector<1x32xf32>
    %59 = arith.mulf %54, %56 : vector<1x32xf32>
    %60 = arith.addf %58, %59 : vector<1x32xf32>
    %61 = math.tanh %60 : vector<1x32xf32>
    %62 = arith.mulf %57, %61 : vector<1x32xf32>
    %63 = vector.extract_strided_slice %17 {offsets = [3, 0], sizes = [1, 128], strides = [1, 1]} : vector<8x128xf32> to vector<1x128xf32>
    %cst_14 = arith.constant dense<0.000000e+00> : vector<1x128xf32>
    %64 = tpu.matmul %62, %2, %cst_14 {dimension_numbers = #tpu.dot_dimension_numbers<[1], [0], [0], [1], [0, 0, 1, 1], [], []>} : vector<1x32xf32>, vector<32x128xf32>, vector<1x128xf32> -> vector<1x128xf32>
    %65 = arith.addf %63, %64 : vector<1x128xf32>
    %66 = math.tanh %65 : vector<1x128xf32>
    %67 = arith.mulf %66, %4 : vector<1x128xf32>
    %68 = arith.addf %67, %5 : vector<1x128xf32>
    %69 = vector.extract_strided_slice %68 {offsets = [0, 0], sizes = [1, 32], strides = [1, 1]} : vector<1x128xf32> to vector<1x32xf32>
    %70 = vector.extract_strided_slice %68 {offsets = [0, 32], sizes = [1, 32], strides = [1, 1]} : vector<1x128xf32> to vector<1x32xf32>
    %71 = vector.extract_strided_slice %68 {offsets = [0, 64], sizes = [1, 32], strides = [1, 1]} : vector<1x128xf32> to vector<1x32xf32>
    %72 = vector.extract_strided_slice %68 {offsets = [0, 96], sizes = [1, 32], strides = [1, 1]} : vector<1x128xf32> to vector<1x32xf32>
    %73 = arith.mulf %70, %60 : vector<1x32xf32>
    %74 = arith.mulf %69, %71 : vector<1x32xf32>
    %75 = arith.addf %73, %74 : vector<1x32xf32>
    %76 = math.tanh %75 : vector<1x32xf32>
    %77 = arith.mulf %72, %76 : vector<1x32xf32>
    %78 = vector.extract_strided_slice %17 {offsets = [4, 0], sizes = [1, 128], strides = [1, 1]} : vector<8x128xf32> to vector<1x128xf32>
    %cst_15 = arith.constant dense<0.000000e+00> : vector<1x128xf32>
    %79 = tpu.matmul %77, %2, %cst_15 {dimension_numbers = #tpu.dot_dimension_numbers<[1], [0], [0], [1], [0, 0, 1, 1], [], []>} : vector<1x32xf32>, vector<32x128xf32>, vector<1x128xf32> -> vector<1x128xf32>
    %80 = arith.addf %78, %79 : vector<1x128xf32>
    %81 = math.tanh %80 : vector<1x128xf32>
    %82 = arith.mulf %81, %4 : vector<1x128xf32>
    %83 = arith.addf %82, %5 : vector<1x128xf32>
    %84 = vector.extract_strided_slice %83 {offsets = [0, 0], sizes = [1, 32], strides = [1, 1]} : vector<1x128xf32> to vector<1x32xf32>
    %85 = vector.extract_strided_slice %83 {offsets = [0, 32], sizes = [1, 32], strides = [1, 1]} : vector<1x128xf32> to vector<1x32xf32>
    %86 = vector.extract_strided_slice %83 {offsets = [0, 64], sizes = [1, 32], strides = [1, 1]} : vector<1x128xf32> to vector<1x32xf32>
    %87 = vector.extract_strided_slice %83 {offsets = [0, 96], sizes = [1, 32], strides = [1, 1]} : vector<1x128xf32> to vector<1x32xf32>
    %88 = arith.mulf %85, %75 : vector<1x32xf32>
    %89 = arith.mulf %84, %86 : vector<1x32xf32>
    %90 = arith.addf %88, %89 : vector<1x32xf32>
    %91 = math.tanh %90 : vector<1x32xf32>
    %92 = arith.mulf %87, %91 : vector<1x32xf32>
    %93 = vector.extract_strided_slice %17 {offsets = [5, 0], sizes = [1, 128], strides = [1, 1]} : vector<8x128xf32> to vector<1x128xf32>
    %cst_16 = arith.constant dense<0.000000e+00> : vector<1x128xf32>
    %94 = tpu.matmul %92, %2, %cst_16 {dimension_numbers = #tpu.dot_dimension_numbers<[1], [0], [0], [1], [0, 0, 1, 1], [], []>} : vector<1x32xf32>, vector<32x128xf32>, vector<1x128xf32> -> vector<1x128xf32>
    %95 = arith.addf %93, %94 : vector<1x128xf32>
    %96 = math.tanh %95 : vector<1x128xf32>
    %97 = arith.mulf %96, %4 : vector<1x128xf32>
    %98 = arith.addf %97, %5 : vector<1x128xf32>
    %99 = vector.extract_strided_slice %98 {offsets = [0, 0], sizes = [1, 32], strides = [1, 1]} : vector<1x128xf32> to vector<1x32xf32>
    %100 = vector.extract_strided_slice %98 {offsets = [0, 32], sizes = [1, 32], strides = [1, 1]} : vector<1x128xf32> to vector<1x32xf32>
    %101 = vector.extract_strided_slice %98 {offsets = [0, 64], sizes = [1, 32], strides = [1, 1]} : vector<1x128xf32> to vector<1x32xf32>
    %102 = vector.extract_strided_slice %98 {offsets = [0, 96], sizes = [1, 32], strides = [1, 1]} : vector<1x128xf32> to vector<1x32xf32>
    %103 = arith.mulf %100, %90 : vector<1x32xf32>
    %104 = arith.mulf %99, %101 : vector<1x32xf32>
    %105 = arith.addf %103, %104 : vector<1x32xf32>
    %106 = math.tanh %105 : vector<1x32xf32>
    %107 = arith.mulf %102, %106 : vector<1x32xf32>
    %108 = vector.extract_strided_slice %17 {offsets = [6, 0], sizes = [1, 128], strides = [1, 1]} : vector<8x128xf32> to vector<1x128xf32>
    %cst_17 = arith.constant dense<0.000000e+00> : vector<1x128xf32>
    %109 = tpu.matmul %107, %2, %cst_17 {dimension_numbers = #tpu.dot_dimension_numbers<[1], [0], [0], [1], [0, 0, 1, 1], [], []>} : vector<1x32xf32>, vector<32x128xf32>, vector<1x128xf32> -> vector<1x128xf32>
    %110 = arith.addf %108, %109 : vector<1x128xf32>
    %111 = math.tanh %110 : vector<1x128xf32>
    %112 = arith.mulf %111, %4 : vector<1x128xf32>
    %113 = arith.addf %112, %5 : vector<1x128xf32>
    %114 = vector.extract_strided_slice %113 {offsets = [0, 0], sizes = [1, 32], strides = [1, 1]} : vector<1x128xf32> to vector<1x32xf32>
    %115 = vector.extract_strided_slice %113 {offsets = [0, 32], sizes = [1, 32], strides = [1, 1]} : vector<1x128xf32> to vector<1x32xf32>
    %116 = vector.extract_strided_slice %113 {offsets = [0, 64], sizes = [1, 32], strides = [1, 1]} : vector<1x128xf32> to vector<1x32xf32>
    %117 = vector.extract_strided_slice %113 {offsets = [0, 96], sizes = [1, 32], strides = [1, 1]} : vector<1x128xf32> to vector<1x32xf32>
    %118 = arith.mulf %115, %105 : vector<1x32xf32>
    %119 = arith.mulf %114, %116 : vector<1x32xf32>
    %120 = arith.addf %118, %119 : vector<1x32xf32>
    %121 = math.tanh %120 : vector<1x32xf32>
    %122 = arith.mulf %117, %121 : vector<1x32xf32>
    %123 = vector.extract_strided_slice %17 {offsets = [7, 0], sizes = [1, 128], strides = [1, 1]} : vector<8x128xf32> to vector<1x128xf32>
    %cst_18 = arith.constant dense<0.000000e+00> : vector<1x128xf32>
    %124 = tpu.matmul %122, %2, %cst_18 {dimension_numbers = #tpu.dot_dimension_numbers<[1], [0], [0], [1], [0, 0, 1, 1], [], []>} : vector<1x32xf32>, vector<32x128xf32>, vector<1x128xf32> -> vector<1x128xf32>
    %125 = arith.addf %123, %124 : vector<1x128xf32>
    %126 = math.tanh %125 : vector<1x128xf32>
    %127 = arith.mulf %126, %4 : vector<1x128xf32>
    %128 = arith.addf %127, %5 : vector<1x128xf32>
    %129 = vector.extract_strided_slice %128 {offsets = [0, 0], sizes = [1, 32], strides = [1, 1]} : vector<1x128xf32> to vector<1x32xf32>
    %130 = vector.extract_strided_slice %128 {offsets = [0, 32], sizes = [1, 32], strides = [1, 1]} : vector<1x128xf32> to vector<1x32xf32>
    %131 = vector.extract_strided_slice %128 {offsets = [0, 64], sizes = [1, 32], strides = [1, 1]} : vector<1x128xf32> to vector<1x32xf32>
    %132 = vector.extract_strided_slice %128 {offsets = [0, 96], sizes = [1, 32], strides = [1, 1]} : vector<1x128xf32> to vector<1x32xf32>
    %133 = arith.mulf %130, %120 : vector<1x32xf32>
    %134 = arith.mulf %129, %131 : vector<1x32xf32>
    %135 = arith.addf %133, %134 : vector<1x32xf32>
    %136 = math.tanh %135 : vector<1x32xf32>
    %137 = arith.mulf %132, %136 : vector<1x32xf32>
    %138 = arith.mulf %137, %11 : vector<1x32xf32>
    %cst_19 = arith.constant dense<0.000000e+00> : vector<1xf32>
    %139 = vector.multi_reduction <add>, %138, %cst_19 [1] : vector<1x32xf32> to vector<1xf32>
    %140 = vector.shape_cast %139 : vector<1xf32> to vector<1x1xf32>
    %141 = arith.addf %140, %13 : vector<1x1xf32>
    %142 = arith.negf %141 : vector<1x1xf32>
    %143 = math.exp %142 : vector<1x1xf32>
    %cst_20 = arith.constant 1.000000e+00 : f32
    %144 = vector.broadcast %cst_20 : f32 to vector<1x1xf32>
    %145 = arith.addf %144, %143 : vector<1x1xf32>
    %146 = arith.divf %144, %145 : vector<1x1xf32>
    %c0_21 = arith.constant 0 : index
    %c0_22 = arith.constant 0 : index
    %147 = vector.load %arg3[%c0_21, %c0_22] : memref<1x1xf32, #tpu.memory_space<vmem>>, vector<1x1xf32>
    tpu.vector_store %arg3[%c0_21, %c0_22], %146 {strides = array<i32>} : memref<1x1xf32, #tpu.memory_space<vmem>>, vector<1x1xf32>,
    return
  }
}

</mosaic_0001>

<llo_original>
// kernel: tpu_custom_call.1
$region0: #{tpu_custom_call.1}
  #allocation0 [shape = 'u32[]', space=smem, size = 0x4, offset = 0x4, fixed_abs, tag = 'smem constant byte address 0x4 - core index']
  #allocation1 [shape = 'u32[144,128]{1,0:T(1,128)}', space=vmem, size = 0x12000, scoped, tag = 'internal scratch']
  %s0 = inlined_call_operand.hbm [shape: f32[8,32], index: 0, kind: input, shape index: {}]
  %s1 = inlined_call_operand.hbm [shape: f32[64,128], index: 1, kind: input, shape index: {}]
  %s2 = inlined_call_operand.hbm [shape: f32[8,128], index: 2, kind: input, shape index: {}]
  %s3 = inlined_call_operand.hbm [shape: f32[1,1], index: 3, kind: output, shape index: {}]
  %s4 = sld [smem:[#allocation0]]
  $region34: #{tpu_custom_call.1} parent=0
    _
  %s6 = ssub.s32 1, %s4
  %s7 = scalar_select 0, %s6, %s4
  $region1: #{tpu_custom_call.1} parent=0
    #allocation2 [shape = 'u8[4096]{0}', space=vmem, size = 0x1000, scoped, tag = 'input window, operand 0, single buffered']
    #allocation3 [shape = 's32[1]{0}', space=sflag, size = 0x4, scoped, tag = 'scoped memory for tpu_custom_call.1']
    #allocation4 [shape = 's32[1]{0}', space=sflag, size = 0x4, scoped, tag = 'scoped memory for tpu_custom_call.1']
    #allocation5 [shape = 'u8[32768]{0}', space=vmem, size = 0x8000, scoped, tag = 'input window, operand 1, single buffered']
    #allocation6 [shape = 's32[1]{0}', space=sflag, size = 0x4, scoped, tag = 'scoped memory for tpu_custom_call.1']
    #allocation7 [shape = 'u8[4096]{0}', space=vmem, size = 0x1000, scoped, tag = 'input window, operand 2, single buffered']
    #allocation8 [shape = 'u8[512]{0}', space=vmem, size = 0x400, scoped, tag = 'output window, operand 0, single buffered']
    %8 = vsyncpa [#allocation3], 0
    %9 = vsyncpa [#allocation6], 0
    %10 = vsyncpa [#allocation4], 0
    // Predicated region
    $region2: #{tpu_custom_call.1} parent=1 // pred_check
      _
    $region3: #{tpu_custom_call.1} parent=1 // pred_check_branch
      %12 = sbr.rel (0) target = $region5
    $region4: #{tpu_custom_call.1} parent=1 // pred_region
      %s14 = ssub.s32 128, 128
      %15 = vsyncadd [#allocation3], %s14
      %s17 = sshll.u32 [#allocation2], 4
      %s18 = int_to_ptr.vmem [resolvable:$true] %s17
      %20 = dma.hbm_to_vmem [thread:$0]  %s0, 128, %s18, [#allocation3]
    $region5: #{tpu_custom_call.1} parent=1 // pred_fallthru
      _
    // Predicated region
    $region6: #{tpu_custom_call.1} parent=1 // pred_check
      _
    $region7: #{tpu_custom_call.1} parent=1 // pred_check_branch
      %22 = sbr.rel (0) target = $region9
    $region8: #{tpu_custom_call.1} parent=1 // pred_region
      %s24 = ssub.s32 1024, 1024
      %25 = vsyncadd [#allocation6], %s24
      %s26 = sshll.u32 [#allocation5], 4
      %s27 = int_to_ptr.vmem [resolvable:$true] %s26
      %32 = dma.hbm_to_vmem [thread:$0]  %s1, 1024, %s27, [#allocation6], 128, 128, 8
    $region9: #{tpu_custom_call.1} parent=1 // pred_fallthru
      _
    // Predicated region
    $region10: #{tpu_custom_call.1} parent=1 // pred_check
      _
    $region11: #{tpu_custom_call.1} parent=1 // pred_check_branch
      %34 = sbr.rel (0) target = $region13
    $region12: #{tpu_custom_call.1} parent=1 // pred_region
      %s36 = ssub.s32 128, 128
      %37 = vsyncadd [#allocation6], %s36
      %s39 = sshll.u32 [#allocation7], 4
      %s40 = int_to_ptr.vmem [resolvable:$true] %s39
      %42 = dma.hbm_to_vmem [thread:$0]  %s2, 128, %s40, [#allocation6]
    $region13: #{tpu_custom_call.1} parent=1 // pred_fallthru
      _
    // Predicated region
    $region14: #{tpu_custom_call.1} parent=1 // pred_check
      _
    $region15: #{tpu_custom_call.1} parent=1 // pred_check_branch
      %44 = sbr.rel (0) target = $region17
    $region16: #{tpu_custom_call.1} parent=1 // pred_region
      %45 = dma.done [#allocation3], 128
    $region17: #{tpu_custom_call.1} parent=1 // pred_fallthru
      _
    // Predicated region
    $region18: #{tpu_custom_call.1} parent=1 // pred_check
      _
    $region19: #{tpu_custom_call.1} parent=1 // pred_check_branch
      %47 = sbr.rel (0) target = $region21
    $region20: #{tpu_custom_call.1} parent=1 // pred_region
      %48 = dma.done [#allocation6], 1024
    $region21: #{tpu_custom_call.1} parent=1 // pred_fallthru
      _
    // Predicated region
    $region22: #{tpu_custom_call.1} parent=1 // pred_check
      _
    $region23: #{tpu_custom_call.1} parent=1 // pred_check_branch
      %50 = sbr.rel (0) target = $region25
    $region24: #{tpu_custom_call.1} parent=1 // pred_region
      %51 = dma.done [#allocation6], 128
    $region25: #{tpu_custom_call.1} parent=1 // pred_fallthru
      _
    %v52 = vld [vmem:[#allocation5] sm:$0xff]
    %v53 = vld [vmem:[#allocation5 + $0x8] sm:$0xff]
    %v54 = vld [vmem:[#allocation5 + $0x10] sm:$0xff]
    %v55 = vld [vmem:[#allocation5 + $0x18] sm:$0xff]
    %v56 = vld [vmem:[#allocation5 + $0x20] sm:$0xff]
    %v57 = vld [vmem:[#allocation5 + $0x28] sm:$0xff]
    %v58 = vld [vmem:[#allocation5 + $0x30] sm:$0xff]
    %v59 = vld [vmem:[#allocation5 + $0x38] sm:$0xff]
    %v60 = vld [vmem:[#allocation7] sm:$0x1]
    %v61 = vld [vmem:[#allocation7 + $0x1] sm:$0x1]
    %v62 = vld [vmem:[#allocation7 + $0x2] sm:$0x1]
    %v63 = vld [vmem:[#allocation7 + $0x3] sm:$0x1]
    %v64 = vld [vmem:[#allocation7 + $0x4] sm:$0x1]
    %v65 = vld [vmem:[#allocation7 + $0x5] sm:$0x1]
    %v66 = vld [vmem:[#allocation7 + $0x6] sm:$0x1]
    %v67 = vld [vmem:[#allocation2] sm:$0xff]
    %v68 = vlaneseq
    %v69 = vshrl.u32 %v68, 7
    %v70 = vsub.s32 0, %v69
    %v71 = vrot.slane %v60, %v70
    %vm72 = vcmask 261120
    %v74 = vsel %vm72, %v67, 0
    %76 = vmatprep.subr.mxu0 0.0
    %77 = vmatpush1.msra.mxu0 0.0
    %78 = vmatprep.subr.mxu0 0.0
    %79 = vmatpush1.msra.mxu0 0.0
    %80 = vmatprep.subr.mxu0 0.0
    %81 = vmatpush1.msra.mxu0 0.0
    %82 = vmatprep.subr.mxu0 0.0
    %83 = vmatpush1.msra.mxu0 0.0
    %84 = vmatprep.subr.mxu0 0.0
    %85 = vmatpush1.msra.mxu0 0.0
    %86 = vmatprep.subr.mxu0 0.0
    %87 = vmatpush1.msra.mxu0 0.0
    %88 = vmatprep.subr.mxu0 0.0
    %89 = vmatpush1.msra.mxu0 0.0
    %90 = vmatprep.subr.mxu0 0.0
    %91 = vmatpush1.msra.mxu0 0.0
    %92 = vmatprep.subr.mxu0 0.0
    %93 = vmatpush1.msra.mxu0 0.0
    %94 = vmatprep.subr.mxu0 0.0
    %95 = vmatpush1.msra.mxu0 0.0
    %96 = vmatprep.subr.mxu0 0.0
    %97 = vmatpush1.msra.mxu0 0.0
    %98 = vmatprep.subr.mxu0 0.0
    %99 = vmatpush1.msra.mxu0 0.0
    %100 = vmatprep.subr.mxu0 0.0
    %101 = vmatpush1.msra.mxu0 %v55
    %102 = vmatprep.subr.mxu0 0.0
    %103 = vmatpush1.msra.mxu0 %v54
    %104 = vmatprep.subr.mxu0 0.0
    %105 = vmatpush1.msra.mxu0 %v53
    %106 = vmatprep.subr.mxu0 0.0
    %107 = vmatpush1.msra.mxu0 %v52
    %108 = vmatprep.subr.mxu0 0.0
    %109 = vmatpush2.msra.mxu0 0.0
    %110 = vmatprep.subr.mxu0 0.0
    %111 = vmatpush2.msra.mxu0 0.0
    %112 = vmatprep.subr.mxu0 0.0
    %113 = vmatpush2.msra.mxu0 0.0
    %114 = vmatprep.subr.mxu0 0.0
    %115 = vmatpush2.msra.mxu0 0.0
    %116 = vmatprep.subr.mxu0 0.0
    %117 = vmatpush2.msra.mxu0 0.0
    %118 = vmatprep.subr.mxu0 0.0
    %119 = vmatpush2.msra.mxu0 0.0
    %120 = vmatprep.subr.mxu0 0.0
    %121 = vmatpush2.msra.mxu0 0.0
    %122 = vmatprep.subr.mxu0 0.0
    %123 = vmatpush2.msra.mxu0 0.0
    %124 = vmatprep.subr.mxu0 0.0
    %125 = vmatpush2.msra.mxu0 0.0
    %126 = vmatprep.subr.mxu0 0.0
    %127 = vmatpush2.msra.mxu0 0.0
    %128 = vmatprep.subr.mxu0 0.0
    %129 = vmatpush2.msra.mxu0 0.0
    %130 = vmatprep.subr.mxu0 0.0
    %131 = vmatpush2.msra.mxu0 0.0
    %132 = vmatprep.subr.mxu0 0.0
    %133 = vmatpush2.msra.mxu0 0.0
    %134 = vmatprep.subr.mxu0 0.0
    %135 = vmatpush2.msra.mxu0 0.0
    %136 = vmatprep.subr.mxu0 0.0
    %137 = vmatpush2.msra.mxu0 0.0
    %138 = vmatprep.subr.mxu0 0.0
    %139 = vmatpush2.msra.mxu0 0.0
    %140 = vmatprep.mubr.f32.mxu0 0.0
    %141 = vmatmul.mubr.f32.gmra.mxu0 %v74
    %v142 = vpop.f32.mrf.mxu0
    %v143 = vadd.f32 %v71, %v142
    %v144 = vpop.f32.mrf.mxu0
    %145 = vdwg.mxu0
    %v147 = vsel %vm72, %v63, 0
    %149 = vmatprep.subr.mxu0 0.0
    %150 = vmatpush1.msra.mxu0 0.0
    %151 = vmatprep.subr.mxu0 0.0
    %152 = vmatpush1.msra.mxu0 0.0
    %153 = vmatprep.subr.mxu0 0.0
    %154 = vmatpush1.msra.mxu0 0.0
    %155 = vmatprep.subr.mxu0 0.0
    %156 = vmatpush1.msra.mxu0 0.0
    %157 = vmatprep.subr.mxu0 0.0
    %158 = vmatpush1.msra.mxu0 0.0
    %159 = vmatprep.subr.mxu0 0.0
    %160 = vmatpush1.msra.mxu0 0.0
    %161 = vmatprep.subr.mxu0 0.0
    %162 = vmatpush1.msra.mxu0 0.0
    %163 = vmatprep.subr.mxu0 0.0
    %164 = vmatpush1.msra.mxu0 0.0
    %165 = vmatprep.subr.mxu0 0.0
    %166 = vmatpush1.msra.mxu0 0.0
    %167 = vmatprep.subr.mxu0 0.0
    %168 = vmatpush1.msra.mxu0 0.0
    %169 = vmatprep.subr.mxu0 0.0
    %170 = vmatpush1.msra.mxu0 0.0
    %171 = vmatprep.subr.mxu0 0.0
    %172 = vmatpush1.msra.mxu0 0.0
    %173 = vmatprep.subr.mxu0 0.0
    %174 = vmatpush1.msra.mxu0 %v59
    %175 = vmatprep.subr.mxu0 0.0
    %176 = vmatpush1.msra.mxu0 %v58
    %177 = vmatprep.subr.mxu0 0.0
    %178 = vmatpush1.msra.mxu0 %v57
    %179 = vmatprep.subr.mxu0 0.0
    %180 = vmatpush1.msra.mxu0 %v56
    %181 = vmatprep.subr.mxu0 0.0
    %182 = vmatpush2.msra.mxu0 0.0
    %183 = vmatprep.subr.mxu0 0.0
    %184 = vmatpush2.msra.mxu0 0.0
    %185 = vmatprep.subr.mxu0 0.0
    %186 = vmatpush2.msra.mxu0 0.0
    %187 = vmatprep.subr.mxu0 0.0
    %188 = vmatpush2.msra.mxu0 0.0
    %189 = vmatprep.subr.mxu0 0.0
    %190 = vmatpush2.msra.mxu0 0.0
    %191 = vmatprep.subr.mxu0 0.0
    %192 = vmatpush2.msra.mxu0 0.0
    %193 = vmatprep.subr.mxu0 0.0
    %194 = vmatpush2.msra.mxu0 0.0
    %195 = vmatprep.subr.mxu0 0.0
    %196 = vmatpush2.msra.mxu0 0.0
    %197 = vmatprep.subr.mxu0 0.0
    %198 = vmatpush2.msra.mxu0 0.0
    %199 = vmatprep.subr.mxu0 0.0
    %200 = vmatpush2.msra.mxu0 0.0
    %201 = vmatprep.subr.mxu0 0.0
    %202 = vmatpush2.msra.mxu0 0.0
    %203 = vmatprep.subr.mxu0 0.0
    %204 = vmatpush2.msra.mxu0 0.0
    %205 = vmatprep.subr.mxu0 0.0
    %206 = vmatpush2.msra.mxu0 0.0
    %207 = vmatprep.subr.mxu0 0.0
    %208 = vmatpush2.msra.mxu0 0.0
    %209 = vmatprep.subr.mxu0 0.0
    %210 = vmatpush2.msra.mxu0 0.0
    %211 = vmatprep.subr.mxu0 0.0
    %212 = vmatpush2.msra.mxu0 0.0
    %213 = vmatprep.mubr.f32.mxu0 0.0
    %214 = vmatmul.mubr.f32.gmra.mxu0 %v147
    %v215 = vpop.f32.mrf.mxu0
    %v216 = vadd.f32 0.0, %v215
    %v217 = vpop.f32.mrf.mxu0
    %218 = vdwg.mxu0
    %v219 = vadd.f32 %v143, %v216
    %v220 = vtanh.pop %v219
    %v221 = vmul.f32 %v220, %v61
    %v222 = vadd.f32 %v221, %v62
    %224 = vrot.lane.b32.xlu0 %v64, 32
    %v225 = vpop.permute.xlu0 %224
    %v227 = vmul.f32 %v222, %v225
    %229 = vrot.lane.b32.xlu0 %v222, 64
    %v230 = vpop.permute.xlu0 %229
    %v232 = vmul.f32 %v222, %v230
    %234 = vrot.lane.b32.xlu0 %v232, 32
    %v235 = vpop.permute.xlu0 %234
    %v237 = vadd.f32 %v227, %v235
    %v238 = vtanh.pop %v237
    %240 = vrot.lane.b32.xlu0 %v238, 64
    %v241 = vpop.permute.xlu0 %240
    %v243 = vmul.f32 %v222, %v241
    %245 = vrot.lane.b32.xlu0 %v243, 32
    %v246 = vpop.permute.xlu0 %245
    %v247 = vsel %vm72, %v246, 0
    %249 = vmatprep.subr.mxu0 0.0
    %250 = vmatpush1.msra.mxu0 0.0
    %251 = vmatprep.subr.mxu0 0.0
    %252 = vmatpush1.msra.mxu0 0.0
    %253 = vmatprep.subr.mxu0 0.0
    %254 = vmatpush1.msra.mxu0 0.0
    %255 = vmatprep.subr.mxu0 0.0
    %256 = vmatpush1.msra.mxu0 0.0
    %257 = vmatprep.subr.mxu0 0.0
    %258 = vmatpush1.msra.mxu0 0.0
    %259 = vmatprep.subr.mxu0 0.0
    %260 = vmatpush1.msra.mxu0 0.0
    %261 = vmatprep.subr.mxu0 0.0
    %262 = vmatpush1.msra.mxu0 0.0
    %263 = vmatprep.subr.mxu0 0.0
    %264 = vmatpush1.msra.mxu0 0.0
    %265 = vmatprep.subr.mxu0 0.0
    %266 = vmatpush1.msra.mxu0 0.0
    %267 = vmatprep.subr.mxu0 0.0
    %268 = vmatpush1.msra.mxu0 0.0
    %269 = vmatprep.subr.mxu0 0.0
    %270 = vmatpush1.msra.mxu0 0.0
    %271 = vmatprep.subr.mxu0 0.0
    %272 = vmatpush1.msra.mxu0 0.0
    %273 = vmatprep.subr.mxu0 0.0
    %274 = vmatpush1.msra.mxu0 %v59
    %275 = vmatprep.subr.mxu0 0.0
    %276 = vmatpush1.msra.mxu0 %v58
    %277 = vmatprep.subr.mxu0 0.0
    %278 = vmatpush1.msra.mxu0 %v57
    %279 = vmatprep.subr.mxu0 0.0
    %280 = vmatpush1.msra.mxu0 %v56
    %281 = vmatprep.subr.mxu0 0.0
    %282 = vmatpush2.msra.mxu0 0.0
    %283 = vmatprep.subr.mxu0 0.0
    %284 = vmatpush2.msra.mxu0 0.0
    %285 = vmatprep.subr.mxu0 0.0
    %286 = vmatpush2.msra.mxu0 0.0
    %287 = vmatprep.subr.mxu0 0.0
    %288 = vmatpush2.msra.mxu0 0.0
    %289 = vmatprep.subr.mxu0 0.0
    %290 = vmatpush2.msra.mxu0 0.0
    %291 = vmatprep.subr.mxu0 0.0
    %292 = vmatpush2.msra.mxu0 0.0
    %293 = vmatprep.subr.mxu0 0.0
    %294 = vmatpush2.msra.mxu0 0.0
    %295 = vmatprep.subr.mxu0 0.0
    %296 = vmatpush2.msra.mxu0 0.0
    %297 = vmatprep.subr.mxu0 0.0
    %298 = vmatpush2.msra.mxu0 0.0
    %299 = vmatprep.subr.mxu0 0.0
    %300 = vmatpush2.msra.mxu0 0.0
    %301 = vmatprep.subr.mxu0 0.0
    %302 = vmatpush2.msra.mxu0 0.0
    %303 = vmatprep.subr.mxu0 0.0
    %304 = vmatpush2.msra.mxu0 0.0
    %305 = vmatprep.subr.mxu0 0.0
    %306 = vmatpush2.msra.mxu0 0.0
    %307 = vmatprep.subr.mxu0 0.0
    %308 = vmatpush2.msra.mxu0 0.0
    %309 = vmatprep.subr.mxu0 0.0
    %310 = vmatpush2.msra.mxu0 0.0
    %311 = vmatprep.subr.mxu0 0.0
    %312 = vmatpush2.msra.mxu0 0.0
    %313 = vmatprep.mubr.f32.mxu0 0.0
    %314 = vmatmul.mubr.f32.gmra.mxu0 %v247
    %v315 = vpop.f32.mrf.mxu0
    %v316 = vadd.f32 0.0, %v315
    %v317 = vpop.f32.mrf.mxu0
    %318 = vdwg.mxu0
    %v320 = vrot.slane %v316, 7
    %v322 = vadd.f32 %v143, %v320
    %v323 = vtanh.pop %v322
    %v325 = vrot.slane %v61, 7
    %v327 = vmul.f32 %v323, %v325
    %v329 = vrot.slane %v62, 7
    %v331 = vadd.f32 %v327, %v329
    %v333 = vrot.slane %v237, 7
    %v335 = vmul.f32 %v331, %v333
    %337 = vrot.lane.b32.xlu0 %v331, 64
    %v338 = vpop.permute.xlu0 %337
    %v340 = vmul.f32 %v331, %v338
    %342 = vrot.lane.b32.xlu0 %v340, 32
    %v343 = vpop.permute.xlu0 %342
    %v345 = vadd.f32 %v335, %v343
    %v346 = vtanh.pop %v345
    %348 = vrot.lane.b32.xlu0 %v346, 64
    %v349 = vpop.permute.xlu0 %348
    %v351 = vmul.f32 %v331, %v349
    %v353 = vrot.slane %v351, 1
    %354 = vrot.lane.b32.xlu0 %v353, 32
    %v355 = vpop.permute.xlu0 %354
    %v356 = vsel %vm72, %v355, 0
    %358 = vmatprep.subr.mxu0 0.0
    %359 = vmatpush1.msra.mxu0 0.0
    %360 = vmatprep.subr.mxu0 0.0
    %361 = vmatpush1.msra.mxu0 0.0
    %362 = vmatprep.subr.mxu0 0.0
    %363 = vmatpush1.msra.mxu0 0.0
    %364 = vmatprep.subr.mxu0 0.0
    %365 = vmatpush1.msra.mxu0 0.0
    %366 = vmatprep.subr.mxu0 0.0
    %367 = vmatpush1.msra.mxu0 0.0
    %368 = vmatprep.subr.mxu0 0.0
    %369 = vmatpush1.msra.mxu0 0.0
    %370 = vmatprep.subr.mxu0 0.0
    %371 = vmatpush1.msra.mxu0 0.0
    %372 = vmatprep.subr.mxu0 0.0
    %373 = vmatpush1.msra.mxu0 0.0
    %374 = vmatprep.subr.mxu0 0.0
    %375 = vmatpush1.msra.mxu0 0.0
    %376 = vmatprep.subr.mxu0 0.0
    %377 = vmatpush1.msra.mxu0 0.0
    %378 = vmatprep.subr.mxu0 0.0
    %379 = vmatpush1.msra.mxu0 0.0
    %380 = vmatprep.subr.mxu0 0.0
    %381 = vmatpush1.msra.mxu0 0.0
    %382 = vmatprep.subr.mxu0 0.0
    %383 = vmatpush1.msra.mxu0 %v59
    %384 = vmatprep.subr.mxu0 0.0
    %385 = vmatpush1.msra.mxu0 %v58
    %386 = vmatprep.subr.mxu0 0.0
    %387 = vmatpush1.msra.mxu0 %v57
    %388 = vmatprep.subr.mxu0 0.0
    %389 = vmatpush1.msra.mxu0 %v56
    %390 = vmatprep.subr.mxu0 0.0
    %391 = vmatpush2.msra.mxu0 0.0
    %392 = vmatprep.subr.mxu0 0.0
    %393 = vmatpush2.msra.mxu0 0.0
    %394 = vmatprep.subr.mxu0 0.0
    %395 = vmatpush2.msra.mxu0 0.0
    %396 = vmatprep.subr.mxu0 0.0
    %397 = vmatpush2.msra.mxu0 0.0
    %398 = vmatprep.subr.mxu0 0.0
    %399 = vmatpush2.msra.mxu0 0.0
    %400 = vmatprep.subr.mxu0 0.0
    %401 = vmatpush2.msra.mxu0 0.0
    %402 = vmatprep.subr.mxu0 0.0
    %403 = vmatpush2.msra.mxu0 0.0
    %404 = vmatprep.subr.mxu0 0.0
    %405 = vmatpush2.msra.mxu0 0.0
    %406 = vmatprep.subr.mxu0 0.0
    %407 = vmatpush2.msra.mxu0 0.0
    %408 = vmatprep.subr.mxu0 0.0
    %409 = vmatpush2.msra.mxu0 0.0
    %410 = vmatprep.subr.mxu0 0.0
    %411 = vmatpush2.msra.mxu0 0.0
    %412 = vmatprep.subr.mxu0 0.0
    %413 = vmatpush2.msra.mxu0 0.0
    %414 = vmatprep.subr.mxu0 0.0
    %415 = vmatpush2.msra.mxu0 0.0
    %416 = vmatprep.subr.mxu0 0.0
    %417 = vmatpush2.msra.mxu0 0.0
    %418 = vmatprep.subr.mxu0 0.0
    %419 = vmatpush2.msra.mxu0 0.0
    %420 = vmatprep.subr.mxu0 0.0
    %421 = vmatpush2.msra.mxu0 0.0
    %422 = vmatprep.mubr.f32.mxu0 0.0
    %423 = vmatmul.mubr.f32.gmra.mxu0 %v356
    %v424 = vpop.f32.mrf.mxu0
    %v425 = vadd.f32 0.0, %v424
    %v426 = vpop.f32.mrf.mxu0
    %427 = vdwg.mxu0
    %v429 = vrot.slane %v425, 6
    %v431 = vadd.f32 %v143, %v429
    %v432 = vtanh.pop %v431
    %v433 = vrot.slane %v61, 6
    %v435 = vmul.f32 %v432, %v433
    %v436 = vrot.slane %v62, 6
    %v438 = vadd.f32 %v435, %v436
    %v440 = vrot.slane %v345, 7
    %v442 = vmul.f32 %v438, %v440
    %444 = vrot.lane.b32.xlu0 %v438, 64
    %v445 = vpop.permute.xlu0 %444
    %v447 = vmul.f32 %v438, %v445
    %449 = vrot.lane.b32.xlu0 %v447, 32
    %v450 = vpop.permute.xlu0 %449
    %v452 = vadd.f32 %v442, %v450
    %v453 = vtanh.pop %v452
    %455 = vrot.lane.b32.xlu0 %v453, 64
    %v456 = vpop.permute.xlu0 %455
    %v458 = vmul.f32 %v438, %v456
    %v460 = vrot.slane %v458, 2
    %461 = vrot.lane.b32.xlu0 %v460, 32
    %v462 = vpop.permute.xlu0 %461
    %v463 = vsel %vm72, %v462, 0
    %465 = vmatprep.subr.mxu0 0.0
    %466 = vmatpush1.msra.mxu0 0.0
    %467 = vmatprep.subr.mxu0 0.0
    %468 = vmatpush1.msra.mxu0 0.0
    %469 = vmatprep.subr.mxu0 0.0
    %470 = vmatpush1.msra.mxu0 0.0
    %471 = vmatprep.subr.mxu0 0.0
    %472 = vmatpush1.msra.mxu0 0.0
    %473 = vmatprep.subr.mxu0 0.0
    %474 = vmatpush1.msra.mxu0 0.0
    %475 = vmatprep.subr.mxu0 0.0
    %476 = vmatpush1.msra.mxu0 0.0
    %477 = vmatprep.subr.mxu0 0.0
    %478 = vmatpush1.msra.mxu0 0.0
    %479 = vmatprep.subr.mxu0 0.0
    %480 = vmatpush1.msra.mxu0 0.0
    %481 = vmatprep.subr.mxu0 0.0
    %482 = vmatpush1.msra.mxu0 0.0
    %483 = vmatprep.subr.mxu0 0.0
    %484 = vmatpush1.msra.mxu0 0.0
    %485 = vmatprep.subr.mxu0 0.0
    %486 = vmatpush1.msra.mxu0 0.0
    %487 = vmatprep.subr.mxu0 0.0
    %488 = vmatpush1.msra.mxu0 0.0
    %489 = vmatprep.subr.mxu0 0.0
    %490 = vmatpush1.msra.mxu0 %v59
    %491 = vmatprep.subr.mxu0 0.0
    %492 = vmatpush1.msra.mxu0 %v58
    %493 = vmatprep.subr.mxu0 0.0
    %494 = vmatpush1.msra.mxu0 %v57
    %495 = vmatprep.subr.mxu0 0.0
    %496 = vmatpush1.msra.mxu0 %v56
    %497 = vmatprep.subr.mxu0 0.0
    %498 = vmatpush2.msra.mxu0 0.0
    %499 = vmatprep.subr.mxu0 0.0
    %500 = vmatpush2.msra.mxu0 0.0
    %501 = vmatprep.subr.mxu0 0.0
    %502 = vmatpush2.msra.mxu0 0.0
    %503 = vmatprep.subr.mxu0 0.0
    %504 = vmatpush2.msra.mxu0 0.0
    %505 = vmatprep.subr.mxu0 0.0
    %506 = vmatpush2.msra.mxu0 0.0
    %507 = vmatprep.subr.mxu0 0.0
    %508 = vmatpush2.msra.mxu0 0.0
    %509 = vmatprep.subr.mxu0 0.0
    %510 = vmatpush2.msra.mxu0 0.0
    %511 = vmatprep.subr.mxu0 0.0
    %512 = vmatpush2.msra.mxu0 0.0
    %513 = vmatprep.subr.mxu0 0.0
    %514 = vmatpush2.msra.mxu0 0.0
    %515 = vmatprep.subr.mxu0 0.0
    %516 = vmatpush2.msra.mxu0 0.0
    %517 = vmatprep.subr.mxu0 0.0
    %518 = vmatpush2.msra.mxu0 0.0
    %519 = vmatprep.subr.mxu0 0.0
    %520 = vmatpush2.msra.mxu0 0.0
    %521 = vmatprep.subr.mxu0 0.0
    %522 = vmatpush2.msra.mxu0 0.0
    %523 = vmatprep.subr.mxu0 0.0
    %524 = vmatpush2.msra.mxu0 0.0
    %525 = vmatprep.subr.mxu0 0.0
    %526 = vmatpush2.msra.mxu0 0.0
    %527 = vmatprep.subr.mxu0 0.0
    %528 = vmatpush2.msra.mxu0 0.0
    %529 = vmatprep.mubr.f32.mxu0 0.0
    %530 = vmatmul.mubr.f32.gmra.mxu0 %v463
    %v531 = vpop.f32.mrf.mxu0
    %v532 = vadd.f32 0.0, %v531
    %v533 = vpop.f32.mrf.mxu0
    %534 = vdwg.mxu0
    %v536 = vrot.slane %v532, 5
    %v538 = vadd.f32 %v143, %v536
    %v539 = vtanh.pop %v538
    %v540 = vrot.slane %v61, 5
    %v542 = vmul.f32 %v539, %v540
    %v543 = vrot.slane %v62, 5
    %v545 = vadd.f32 %v542, %v543
    %v547 = vrot.slane %v452, 7
    %v549 = vmul.f32 %v545, %v547
    %551 = vrot.lane.b32.xlu0 %v545, 64
    %v552 = vpop.permute.xlu0 %551
    %v554 = vmul.f32 %v545, %v552
    %556 = vrot.lane.b32.xlu0 %v554, 32
    %v557 = vpop.permute.xlu0 %556
    %v559 = vadd.f32 %v549, %v557
    %v560 = vtanh.pop %v559
    %562 = vrot.lane.b32.xlu0 %v560, 64
    %v563 = vpop.permute.xlu0 %562
    %v565 = vmul.f32 %v545, %v563
    %v567 = vrot.slane %v565, 3
    %568 = vrot.lane.b32.xlu0 %v567, 32
    %v569 = vpop.permute.xlu0 %568
    %v570 = vsel %vm72, %v569, 0
    %572 = vmatprep.subr.mxu0 0.0
    %573 = vmatpush1.msra.mxu0 0.0
    %574 = vmatprep.subr.mxu0 0.0
    %575 = vmatpush1.msra.mxu0 0.0
    %576 = vmatprep.subr.mxu0 0.0
    %577 = vmatpush1.msra.mxu0 0.0
    %578 = vmatprep.subr.mxu0 0.0
    %579 = vmatpush1.msra.mxu0 0.0
    %580 = vmatprep.subr.mxu0 0.0
    %581 = vmatpush1.msra.mxu0 0.0
    %582 = vmatprep.subr.mxu0 0.0
    %583 = vmatpush1.msra.mxu0 0.0
    %584 = vmatprep.subr.mxu0 0.0
    %585 = vmatpush1.msra.mxu0 0.0
    %586 = vmatprep.subr.mxu0 0.0
    %587 = vmatpush1.msra.mxu0 0.0
    %588 = vmatprep.subr.mxu0 0.0
    %589 = vmatpush1.msra.mxu0 0.0
    %590 = vmatprep.subr.mxu0 0.0
    %591 = vmatpush1.msra.mxu0 0.0
    %592 = vmatprep.subr.mxu0 0.0
    %593 = vmatpush1.msra.mxu0 0.0
    %594 = vmatprep.subr.mxu0 0.0
    %595 = vmatpush1.msra.mxu0 0.0
    %596 = vmatprep.subr.mxu0 0.0
    %597 = vmatpush1.msra.mxu0 %v59
    %598 = vmatprep.subr.mxu0 0.0
    %599 = vmatpush1.msra.mxu0 %v58
    %600 = vmatprep.subr.mxu0 0.0
    %601 = vmatpush1.msra.mxu0 %v57
    %602 = vmatprep.subr.mxu0 0.0
    %603 = vmatpush1.msra.mxu0 %v56
    %604 = vmatprep.subr.mxu0 0.0
    %605 = vmatpush2.msra.mxu0 0.0
    %606 = vmatprep.subr.mxu0 0.0
    %607 = vmatpush2.msra.mxu0 0.0
    %608 = vmatprep.subr.mxu0 0.0
    %609 = vmatpush2.msra.mxu0 0.0
    %610 = vmatprep.subr.mxu0 0.0
    %611 = vmatpush2.msra.mxu0 0.0
    %612 = vmatprep.subr.mxu0 0.0
    %613 = vmatpush2.msra.mxu0 0.0
    %614 = vmatprep.subr.mxu0 0.0
    %615 = vmatpush2.msra.mxu0 0.0
    %616 = vmatprep.subr.mxu0 0.0
    %617 = vmatpush2.msra.mxu0 0.0
    %618 = vmatprep.subr.mxu0 0.0
    %619 = vmatpush2.msra.mxu0 0.0
    %620 = vmatprep.subr.mxu0 0.0
    %621 = vmatpush2.msra.mxu0 0.0
    %622 = vmatprep.subr.mxu0 0.0
    %623 = vmatpush2.msra.mxu0 0.0
    %624 = vmatprep.subr.mxu0 0.0
    %625 = vmatpush2.msra.mxu0 0.0
    %626 = vmatprep.subr.mxu0 0.0
    %627 = vmatpush2.msra.mxu0 0.0
    %628 = vmatprep.subr.mxu0 0.0
    %629 = vmatpush2.msra.mxu0 0.0
    %630 = vmatprep.subr.mxu0 0.0
    %631 = vmatpush2.msra.mxu0 0.0
    %632 = vmatprep.subr.mxu0 0.0
    %633 = vmatpush2.msra.mxu0 0.0
    %634 = vmatprep.subr.mxu0 0.0
    %635 = vmatpush2.msra.mxu0 0.0
    %636 = vmatprep.mubr.f32.mxu0 0.0
    %637 = vmatmul.mubr.f32.gmra.mxu0 %v570
    %v638 = vpop.f32.mrf.mxu0
    %v639 = vadd.f32 0.0, %v638
    %v640 = vpop.f32.mrf.mxu0
    %641 = vdwg.mxu0
    %v643 = vrot.slane %v639, 4
    %v645 = vadd.f32 %v143, %v643
    %v646 = vtanh.pop %v645
    %v647 = vrot.slane %v61, 4
    %v649 = vmul.f32 %v646, %v647
    %v650 = vrot.slane %v62, 4
    %v652 = vadd.f32 %v649, %v650
    %v654 = vrot.slane %v559, 7
    %v656 = vmul.f32 %v652, %v654
    %658 = vrot.lane.b32.xlu0 %v652, 64
    %v659 = vpop.permute.xlu0 %658
    %v661 = vmul.f32 %v652, %v659
    %663 = vrot.lane.b32.xlu0 %v661, 32
    %v664 = vpop.permute.xlu0 %663
    %v666 = vadd.f32 %v656, %v664
    %v667 = vtanh.pop %v666
    %669 = vrot.lane.b32.xlu0 %v667, 64
    %v670 = vpop.permute.xlu0 %669
    %v672 = vmul.f32 %v652, %v670
    %v674 = vrot.slane %v672, 4
    %675 = vrot.lane.b32.xlu0 %v674, 32
    %v676 = vpop.permute.xlu0 %675
    %v677 = vsel %vm72, %v676, 0
    %679 = vmatprep.subr.mxu0 0.0
    %680 = vmatpush1.msra.mxu0 0.0
    %681 = vmatprep.subr.mxu0 0.0
    %682 = vmatpush1.msra.mxu0 0.0
    %683 = vmatprep.subr.mxu0 0.0
    %684 = vmatpush1.msra.mxu0 0.0
    %685 = vmatprep.subr.mxu0 0.0
    %686 = vmatpush1.msra.mxu0 0.0
    %687 = vmatprep.subr.mxu0 0.0
    %688 = vmatpush1.msra.mxu0 0.0
    %689 = vmatprep.subr.mxu0 0.0
    %690 = vmatpush1.msra.mxu0 0.0
    %691 = vmatprep.subr.mxu0 0.0
    %692 = vmatpush1.msra.mxu0 0.0
    %693 = vmatprep.subr.mxu0 0.0
    %694 = vmatpush1.msra.mxu0 0.0
    %695 = vmatprep.subr.mxu0 0.0
    %696 = vmatpush1.msra.mxu0 0.0
    %697 = vmatprep.subr.mxu0 0.0
    %698 = vmatpush1.msra.mxu0 0.0
    %699 = vmatprep.subr.mxu0 0.0
    %700 = vmatpush1.msra.mxu0 0.0
    %701 = vmatprep.subr.mxu0 0.0
    %702 = vmatpush1.msra.mxu0 0.0
    %703 = vmatprep.subr.mxu0 0.0
    %704 = vmatpush1.msra.mxu0 %v59
    %705 = vmatprep.subr.mxu0 0.0
    %706 = vmatpush1.msra.mxu0 %v58
    %707 = vmatprep.subr.mxu0 0.0
    %708 = vmatpush1.msra.mxu0 %v57
    %709 = vmatprep.subr.mxu0 0.0
    %710 = vmatpush1.msra.mxu0 %v56
    %711 = vmatprep.subr.mxu0 0.0
    %712 = vmatpush2.msra.mxu0 0.0
    %713 = vmatprep.subr.mxu0 0.0
    %714 = vmatpush2.msra.mxu0 0.0
    %715 = vmatprep.subr.mxu0 0.0
    %716 = vmatpush2.msra.mxu0 0.0
    %717 = vmatprep.subr.mxu0 0.0
    %718 = vmatpush2.msra.mxu0 0.0
    %719 = vmatprep.subr.mxu0 0.0
    %720 = vmatpush2.msra.mxu0 0.0
    %721 = vmatprep.subr.mxu0 0.0
    %722 = vmatpush2.msra.mxu0 0.0
    %723 = vmatprep.subr.mxu0 0.0
    %724 = vmatpush2.msra.mxu0 0.0
    %725 = vmatprep.subr.mxu0 0.0
    %726 = vmatpush2.msra.mxu0 0.0
    %727 = vmatprep.subr.mxu0 0.0
    %728 = vmatpush2.msra.mxu0 0.0
    %729 = vmatprep.subr.mxu0 0.0
    %730 = vmatpush2.msra.mxu0 0.0
    %731 = vmatprep.subr.mxu0 0.0
    %732 = vmatpush2.msra.mxu0 0.0
    %733 = vmatprep.subr.mxu0 0.0
    %734 = vmatpush2.msra.mxu0 0.0
    %735 = vmatprep.subr.mxu0 0.0
    %736 = vmatpush2.msra.mxu0 0.0
    %737 = vmatprep.subr.mxu0 0.0
    %738 = vmatpush2.msra.mxu0 0.0
    %739 = vmatprep.subr.mxu0 0.0
    %740 = vmatpush2.msra.mxu0 0.0
    %741 = vmatprep.subr.mxu0 0.0
    %742 = vmatpush2.msra.mxu0 0.0
    %743 = vmatprep.mubr.f32.mxu0 0.0
    %744 = vmatmul.mubr.f32.gmra.mxu0 %v677
    %v745 = vpop.f32.mrf.mxu0
    %v746 = vadd.f32 0.0, %v745
    %v747 = vpop.f32.mrf.mxu0
    %748 = vdwg.mxu0
    %v750 = vrot.slane %v746, 3
    %v752 = vadd.f32 %v143, %v750
    %v753 = vtanh.pop %v752
    %v754 = vrot.slane %v61, 3
    %v756 = vmul.f32 %v753, %v754
    %v757 = vrot.slane %v62, 3
    %v759 = vadd.f32 %v756, %v757
    %v761 = vrot.slane %v666, 7
    %v763 = vmul.f32 %v759, %v761
    %765 = vrot.lane.b32.xlu0 %v759, 64
    %v766 = vpop.permute.xlu0 %765
    %v768 = vmul.f32 %v759, %v766
    %770 = vrot.lane.b32.xlu0 %v768, 32
    %v771 = vpop.permute.xlu0 %770
    %v773 = vadd.f32 %v763, %v771
    %v774 = vtanh.pop %v773
    %776 = vrot.lane.b32.xlu0 %v774, 64
    %v777 = vpop.permute.xlu0 %776
    %v779 = vmul.f32 %v759, %v777
    %v781 = vrot.slane %v779, 5
    %782 = vrot.lane.b32.xlu0 %v781, 32
    %v783 = vpop.permute.xlu0 %782
    %v784 = vsel %vm72, %v783, 0
    %786 = vmatprep.subr.mxu0 0.0
    %787 = vmatpush1.msra.mxu0 0.0
    %788 = vmatprep.subr.mxu0 0.0
    %789 = vmatpush1.msra.mxu0 0.0
    %790 = vmatprep.subr.mxu0 0.0
    %791 = vmatpush1.msra.mxu0 0.0
    %792 = vmatprep.subr.mxu0 0.0
    %793 = vmatpush1.msra.mxu0 0.0
    %794 = vmatprep.subr.mxu0 0.0
    %795 = vmatpush1.msra.mxu0 0.0
    %796 = vmatprep.subr.mxu0 0.0
    %797 = vmatpush1.msra.mxu0 0.0
    %798 = vmatprep.subr.mxu0 0.0
    %799 = vmatpush1.msra.mxu0 0.0
    %800 = vmatprep.subr.mxu0 0.0
    %801 = vmatpush1.msra.mxu0 0.0
    %802 = vmatprep.subr.mxu0 0.0
    %803 = vmatpush1.msra.mxu0 0.0
    %804 = vmatprep.subr.mxu0 0.0
    %805 = vmatpush1.msra.mxu0 0.0
    %806 = vmatprep.subr.mxu0 0.0
    %807 = vmatpush1.msra.mxu0 0.0
    %808 = vmatprep.subr.mxu0 0.0
    %809 = vmatpush1.msra.mxu0 0.0
    %810 = vmatprep.subr.mxu0 0.0
    %811 = vmatpush1.msra.mxu0 %v59
    %812 = vmatprep.subr.mxu0 0.0
    %813 = vmatpush1.msra.mxu0 %v58
    %814 = vmatprep.subr.mxu0 0.0
    %815 = vmatpush1.msra.mxu0 %v57
    %816 = vmatprep.subr.mxu0 0.0
    %817 = vmatpush1.msra.mxu0 %v56
    %818 = vmatprep.subr.mxu0 0.0
    %819 = vmatpush2.msra.mxu0 0.0
    %820 = vmatprep.subr.mxu0 0.0
    %821 = vmatpush2.msra.mxu0 0.0
    %822 = vmatprep.subr.mxu0 0.0
    %823 = vmatpush2.msra.mxu0 0.0
    %824 = vmatprep.subr.mxu0 0.0
    %825 = vmatpush2.msra.mxu0 0.0
    %826 = vmatprep.subr.mxu0 0.0
    %827 = vmatpush2.msra.mxu0 0.0
    %828 = vmatprep.subr.mxu0 0.0
    %829 = vmatpush2.msra.mxu0 0.0
    %830 = vmatprep.subr.mxu0 0.0
    %831 = vmatpush2.msra.mxu0 0.0
    %832 = vmatprep.subr.mxu0 0.0
    %833 = vmatpush2.msra.mxu0 0.0
    %834 = vmatprep.subr.mxu0 0.0
    %835 = vmatpush2.msra.mxu0 0.0
    %836 = vmatprep.subr.mxu0 0.0
    %837 = vmatpush2.msra.mxu0 0.0
    %838 = vmatprep.subr.mxu0 0.0
    %839 = vmatpush2.msra.mxu0 0.0
    %840 = vmatprep.subr.mxu0 0.0
    %841 = vmatpush2.msra.mxu0 0.0
    %842 = vmatprep.subr.mxu0 0.0
    %843 = vmatpush2.msra.mxu0 0.0
    %844 = vmatprep.subr.mxu0 0.0
    %845 = vmatpush2.msra.mxu0 0.0
    %846 = vmatprep.subr.mxu0 0.0
    %847 = vmatpush2.msra.mxu0 0.0
    %848 = vmatprep.subr.mxu0 0.0
    %849 = vmatpush2.msra.mxu0 0.0
    %850 = vmatprep.mubr.f32.mxu0 0.0
    %851 = vmatmul.mubr.f32.gmra.mxu0 %v784
    %v852 = vpop.f32.mrf.mxu0
    %v853 = vadd.f32 0.0, %v852
    %v854 = vpop.f32.mrf.mxu0
    %855 = vdwg.mxu0
    %v857 = vrot.slane %v853, 2
    %v859 = vadd.f32 %v143, %v857
    %v860 = vtanh.pop %v859
    %v861 = vrot.slane %v61, 2
    %v863 = vmul.f32 %v860, %v861
    %v864 = vrot.slane %v62, 2
    %v866 = vadd.f32 %v863, %v864
    %v868 = vrot.slane %v773, 7
    %v870 = vmul.f32 %v866, %v868
    %872 = vrot.lane.b32.xlu0 %v866, 64
    %v873 = vpop.permute.xlu0 %872
    %v875 = vmul.f32 %v866, %v873
    %877 = vrot.lane.b32.xlu0 %v875, 32
    %v878 = vpop.permute.xlu0 %877
    %v880 = vadd.f32 %v870, %v878
    %v881 = vtanh.pop %v880
    %883 = vrot.lane.b32.xlu0 %v881, 64
    %v884 = vpop.permute.xlu0 %883
    %v886 = vmul.f32 %v866, %v884
    %v888 = vrot.slane %v886, 6
    %889 = vrot.lane.b32.xlu0 %v888, 32
    %v890 = vpop.permute.xlu0 %889
    %v891 = vsel %vm72, %v890, 0
    %893 = vmatprep.subr.mxu0 0.0
    %894 = vmatpush1.msra.mxu0 0.0
    %895 = vmatprep.subr.mxu0 0.0
    %896 = vmatpush1.msra.mxu0 0.0
    %897 = vmatprep.subr.mxu0 0.0
    %898 = vmatpush1.msra.mxu0 0.0
    %899 = vmatprep.subr.mxu0 0.0
    %900 = vmatpush1.msra.mxu0 0.0
    %901 = vmatprep.subr.mxu0 0.0
    %902 = vmatpush1.msra.mxu0 0.0
    %903 = vmatprep.subr.mxu0 0.0
    %904 = vmatpush1.msra.mxu0 0.0
    %905 = vmatprep.subr.mxu0 0.0
    %906 = vmatpush1.msra.mxu0 0.0
    %907 = vmatprep.subr.mxu0 0.0
    %908 = vmatpush1.msra.mxu0 0.0
    %909 = vmatprep.subr.mxu0 0.0
    %910 = vmatpush1.msra.mxu0 0.0
    %911 = vmatprep.subr.mxu0 0.0
    %912 = vmatpush1.msra.mxu0 0.0
    %913 = vmatprep.subr.mxu0 0.0
    %914 = vmatpush1.msra.mxu0 0.0
    %915 = vmatprep.subr.mxu0 0.0
    %916 = vmatpush1.msra.mxu0 0.0
    %917 = vmatprep.subr.mxu0 0.0
    %918 = vmatpush1.msra.mxu0 %v59
    %919 = vmatprep.subr.mxu0 0.0
    %920 = vmatpush1.msra.mxu0 %v58
    %921 = vmatprep.subr.mxu0 0.0
    %922 = vmatpush1.msra.mxu0 %v57
    %923 = vmatprep.subr.mxu0 0.0
    %924 = vmatpush1.msra.mxu0 %v56
    %925 = vmatprep.subr.mxu0 0.0
    %926 = vmatpush2.msra.mxu0 0.0
    %927 = vmatprep.subr.mxu0 0.0
    %928 = vmatpush2.msra.mxu0 0.0
    %929 = vmatprep.subr.mxu0 0.0
    %930 = vmatpush2.msra.mxu0 0.0
    %931 = vmatprep.subr.mxu0 0.0
    %932 = vmatpush2.msra.mxu0 0.0
    %933 = vmatprep.subr.mxu0 0.0
    %934 = vmatpush2.msra.mxu0 0.0
    %935 = vmatprep.subr.mxu0 0.0
    %936 = vmatpush2.msra.mxu0 0.0
    %937 = vmatprep.subr.mxu0 0.0
    %938 = vmatpush2.msra.mxu0 0.0
    %939 = vmatprep.subr.mxu0 0.0
    %940 = vmatpush2.msra.mxu0 0.0
    %941 = vmatprep.subr.mxu0 0.0
    %942 = vmatpush2.msra.mxu0 0.0
    %943 = vmatprep.subr.mxu0 0.0
    %944 = vmatpush2.msra.mxu0 0.0
    %945 = vmatprep.subr.mxu0 0.0
    %946 = vmatpush2.msra.mxu0 0.0
    %947 = vmatprep.subr.mxu0 0.0
    %948 = vmatpush2.msra.mxu0 0.0
    %949 = vmatprep.subr.mxu0 0.0
    %950 = vmatpush2.msra.mxu0 0.0
    %951 = vmatprep.subr.mxu0 0.0
    %952 = vmatpush2.msra.mxu0 0.0
    %953 = vmatprep.subr.mxu0 0.0
    %954 = vmatpush2.msra.mxu0 0.0
    %955 = vmatprep.subr.mxu0 0.0
    %956 = vmatpush2.msra.mxu0 0.0
    %957 = vmatprep.mubr.f32.mxu0 0.0
    %958 = vmatmul.mubr.f32.gmra.mxu0 %v891
    %v959 = vpop.f32.mrf.mxu0
    %v960 = vadd.f32 0.0, %v959
    %v961 = vpop.f32.mrf.mxu0
    %962 = vdwg.mxu0
    %v964 = vrot.slane %v960, 1
    %v966 = vadd.f32 %v143, %v964
    %v967 = vtanh.pop %v966
    %v968 = vrot.slane %v61, 1
    %v970 = vmul.f32 %v967, %v968
    %v971 = vrot.slane %v62, 1
    %v973 = vadd.f32 %v970, %v971
    %v975 = vrot.slane %v880, 7
    %v977 = vmul.f32 %v973, %v975
    %979 = vrot.lane.b32.xlu0 %v973, 64
    %v980 = vpop.permute.xlu0 %979
    %v982 = vmul.f32 %v973, %v980
    %984 = vrot.lane.b32.xlu0 %v982, 32
    %v985 = vpop.permute.xlu0 %984
    %v987 = vadd.f32 %v977, %v985
    %v988 = vtanh.pop %v987
    %990 = vrot.lane.b32.xlu0 %v988, 64
    %v991 = vpop.permute.xlu0 %990
    %v993 = vmul.f32 %v973, %v991
    %v995 = vrot.slane %v65, 1
    %996 = vrot.lane.b32.xlu0 %v995, 96
    %v997 = vpop.permute.xlu0 %996
    %v999 = vmul.f32 %v993, %v997
    %1001 = vrot.lane.b32.xlu0 %v999, 32
    %v1002 = vpop.permute.xlu0 %1001
    %vm1004 = vcmask 261127
    %v1005 = vsel %vm1004, %v1002, 0.0
    %1006 = vadd.xlane.f32.xlu0 %v1005
    %v1007 = vpop.xlane.xlu0 %1006
    %v1009 = vrot.slane %v66, 1
    %v1011 = vadd.f32 %v1007, %v1009
    %v1012 = vxor.u32 %v1011, 2147483648
    %v1013 = vmul.f32 %v1012, 1.442695
    %v1014 = vpow.pop %v1013
    %v1015 = vadd.f32 %v1014, 1.0
    %v1016 = vrcp.pop %v1015
    %v1017 = vmul.f32 1.0, %v1016
    %vm1018 = vcmask 7175
    %1019 = vst.msk [vmem:[#allocation8 - $0x7] sm:$0x80] %vm1018, %v1017
    // Predicated region
    $region26: #{tpu_custom_call.1} parent=1 // pred_check
      _
    $region27: #{tpu_custom_call.1} parent=1 // pred_check_branch
      %1021 = sbr.rel (0) target = $region29
    $region28: #{tpu_custom_call.1} parent=1 // pred_region
      %s1023 = ssub.s32 16, 16
      %1024 = vsyncadd [#allocation4], %s1023
      %s1026 = sshll.u32 [#allocation8], 4
      %s1027 = int_to_ptr.vmem [resolvable:$true] %s1026
      %1029 = dma.vmem_to_hbm [thread:$0]  %s1027, 16, %s3, [#allocation4]
    $region29: #{tpu_custom_call.1} parent=1 // pred_fallthru
      _
    // Predicated region
    $region30: #{tpu_custom_call.1} parent=1 // pred_check
      _
    $region31: #{tpu_custom_call.1} parent=1 // pred_check_branch
      %1031 = sbr.rel (0) target = $region33
    $region32: #{tpu_custom_call.1} parent=1 // pred_region
      %1032 = dma.done [#allocation4], 16
    $region33: #{tpu_custom_call.1} parent=1 // pred_fallthru
      _
    %1033 = vsyncpa [#allocation3], 1
    %1034 = vsyncpa [#allocation6], 1
    %1035 = vsyncpa [#allocation4], 1

</llo_original>
